<compile_context>
chip_gen: v7x
topology: tpu7x:2x2x1
jax: 0.10.0
libtpu: 0.0.40
codegen_flags: <defaults>
</compile_context>

<pallas_src>
import functools

import jax
import jax.numpy as jnp
from jax.experimental import pallas as pl
from jax.experimental.pallas import tpu as pltpu

EPS = 1e-5
LANE = 128


def _round_up(x, m):
    return (x + m - 1) // m * m


def _vmem_limit_bytes():
    """Generation-aware scoped-VMEM budget (v5e/v6e: 128 MiB phys, v7x: 64)."""
    try:
        cap = int(pltpu.get_tpu_info().vmem_capacity_bytes)
        return max(min(cap * 3 // 4, 100 * 1024 * 1024), 32 * 1024 * 1024)
    except Exception:
        return 32 * 1024 * 1024


VMEM_LIMIT = _vmem_limit_bytes()


def _pick_tile_rows(ohw, k, cp, cout, vmem_budget):
    """Rows per grid step: as large as the VMEM budget comfortably allows."""
    # Per-row bytes: double-buffered bf16 patch tile + double-buffered f32
    # output tile + f32 accumulator / BN-ReLU temporaries.
    per_row = 2 * 2 * k + 2 * 4 * cout + 3 * 4 * cp
    max_rows = (vmem_budget // 2) // max(per_row, 1)
    max_rows = max(128, min(2048, (max_rows // 128) * 128))
    if ohw <= max_rows:
        return _round_up(ohw, 16)   # bf16 packs 16 rows per sublane tile
    return max_rows


# ---------------- fused conv (as matmul) + BN stats + BN/ReLU ---------------
def _fused_kernel(patch_ref, w_ref, gamma_ref, beta_ref, out_ref,
                  sum_sc, sumsq_sc, scale_sc, shift_sc,
                  *, tile_rows, cout, inv_count):
    phase = pl.program_id(0)
    b = pl.program_id(1)
    t = pl.program_id(2)
    first_tile = (b == 0) & (t == 0)

    # (tile_rows, K) @ (K, Cp) on the MXU, bf16 in / f32 accumulate.  The same
    # matmul is recomputed in phase 1 -- cheaper than round-tripping the f32
    # conv intermediate through HBM on a memory-bound pipeline.
    acc = jnp.dot(patch_ref[0], w_ref[...], preferred_element_type=jnp.float32)

    @pl.when(phase == 0)
    def _():
        @pl.when(first_tile)
        def _():
            sum_sc[...] = jnp.zeros_like(sum_sc)
            sumsq_sc[...] = jnp.zeros_like(sumsq_sc)
        # Reduce tile_rows -> 8 sublanes with major-axis adds (pure VALU);
        # the final 8 -> 1 reduction happens exactly once, in phase 1.
        a3 = acc.reshape(tile_rows // 8, 8, acc.shape[-1])
        sum_sc[...] += jnp.sum(a3, axis=0)
        sumsq_sc[...] += jnp.sum(a3 * a3, axis=0)

    @pl.when(phase == 1)
    def _():
        @pl.when(first_tile)
        def _():
            # Fold the BN statistics (training mode, biased variance) into a
            # per-channel scale/shift once, on a (1, Cp) vector.
            # TODO(synk): E[x^2]-E[x]^2 in f32 can cancel for huge row counts;
            # a shifted / two-pass formulation would be numerically safer.
            s = jnp.sum(sum_sc[...], axis=0, keepdims=True)
            sq = jnp.sum(sumsq_sc[...], axis=0, keepdims=True)
            mean = s * inv_count
            var = jnp.maximum(sq * inv_count - mean * mean, 0.0)
            inv_std = jax.lax.rsqrt(var + EPS)
            scale = gamma_ref[...] * inv_std
            scale_sc[...] = scale
            shift_sc[...] = beta_ref[...] - mean * scale

        y = jnp.maximum(acc * scale_sc[...] + shift_sc[...], 0.0)
        # (tile_rows, Cp) -> (Cp, tile_rows); keep only the real channels so
        # the HBM write is Cout wide (not 128-padded) and already channel-major.
        out_ref[0] = jnp.transpose(y)[:cout].astype(out_ref.dtype)


@functools.partial(jax.jit, static_argnames=("stride",))
def dimension_increasing_forward(x_nchw, conv_w, bn_gamma, bn_beta, stride=2):
    """x_nchw: (N, Cin, H, W); conv_w: (Cout, Cin, 3, 3) (PyTorch layout)."""
    n, cin, h, w = x_nchw.shape
    cout = conv_w.shape[0]
    kh = kw = 3
    pad = 1
    oh = (h + 2 * pad - kh) // stride + 1
    ow = (w + 2 * pad - kw) // stride + 1
    ohw = oh * ow
    k = kh * kw * cin
    cp = _round_up(cout, LANE)

    # ---- im2col in bf16, (N, OH*OW, 9*Cin); contraction dim left unpadded ---
    # TODO(synk): fold im2col into the kernel (assemble 3x3/stride-2 patches in
    # VMEM from the raw NHWC input) to remove this materialized patch matrix.
    x_nhwc = jnp.transpose(x_nchw, (0, 2, 3, 1)).astype(jnp.bfloat16)
    xp = jnp.pad(x_nhwc, ((0, 0), (pad, pad), (pad, pad), (0, 0)))
    taps = []
    for i in range(kh):
        for j in range(kw):
            taps.append(xp[:, i:i + stride * (oh - 1) + 1:stride,
                           j:j + stride * (ow - 1) + 1:stride, :])
    patches = jnp.concatenate(taps, axis=-1).reshape(n, ohw, k)

    tile_rows = _pick_tile_rows(ohw, k, cp, cout, VMEM_LIMIT)
    ohw_p = _round_up(ohw, tile_rows)
    if ohw_p != ohw:
        patches = jnp.pad(patches, ((0, 0), (0, ohw_p - ohw), (0, 0)))
    t_blocks = ohw_p // tile_rows

    # (Cout, Cin, 3, 3) -> (kh, kw, cin) x cout -> (K, Cp) bf16.  Only the tiny
    # weight / gamma / beta operands carry the 128-lane padding.
    w_mat = jnp.transpose(conv_w, (2, 3, 1, 0)).reshape(k, cout)
    w_mat = jnp.pad(w_mat, ((0, 0), (0, cp - cout))).astype(jnp.bfloat16)
    gamma = jnp.pad(bn_gamma.astype(jnp.float32), (0, cp - cout)).reshape(1, cp)
    beta = jnp.pad(bn_beta.astype(jnp.float32), (0, cp - cout)).reshape(1, cp)

    # Zero-padded rows contribute 0 to both sums -> divide by the true count.
    inv_count = 1.0 / float(n * ohw)

    kernel = functools.partial(_fused_kernel, tile_rows=tile_rows, cout=cout,
                               inv_count=inv_count)

    flops = 2 * 2 * n * ohw_p * k * cp                 # matmul runs twice
    bytes_accessed = (2 * patches.size * 2 + w_mat.size * 2
                      + n * cout * ohw_p * 4 + 4 * cp * 4)

    out_ncs = pl.pallas_call(
        kernel,
        grid=(2, n, t_blocks),                         # (phase, batch, row tile)
        in_specs=[
            pl.BlockSpec((1, tile_rows, k), lambda p, b, t: (b, t, 0)),
            pl.BlockSpec((k, cp), lambda p, b, t: (0, 0)),      # resident W
            pl.BlockSpec((1, cp), lambda p, b, t: (0, 0)),      # gamma
            pl.BlockSpec((1, cp), lambda p, b, t: (0, 0)),      # beta
        ],
        # Phase 0 parks the output on block (0,0,0) (resident, never written);
        # phase 1 writes every block exactly once before its single writeback.
        out_specs=pl.BlockSpec((1, cout, tile_rows),
                               lambda p, b, t: (p * b, 0, p * t)),
        out_shape=jax.ShapeDtypeStruct((n, cout, ohw_p), jnp.float32),
        scratch_shapes=[
            pltpu.VMEM((8, cp), jnp.float32),     # per-channel sum partials
            pltpu.VMEM((8, cp), jnp.float32),     # per-channel sumsq partials
            pltpu.VMEM((1, cp), jnp.float32),     # folded BN scale
            pltpu.VMEM((1, cp), jnp.float32),     # folded BN shift
        ],
        compiler_params=pltpu.CompilerParams(
            dimension_semantics=("arbitrary", "arbitrary", "arbitrary"),
            vmem_limit_bytes=VMEM_LIMIT),
        cost_estimate=pl.CostEstimate(
            flops=flops, transcendentals=cp, bytes_accessed=bytes_accessed),
    )(patches, w_mat, gamma, beta)

    if ohw_p != ohw:
        out_ncs = out_ncs[:, :, :ohw]
    return out_ncs.reshape(n, cout, oh, ow)            # already NCHW, no transpose


def _reference(x, w, gamma, beta, stride):
    """Pure-JAX reference: conv -> training-mode BN -> ReLU (NCHW)."""
    conv = jax.lax.conv_general_dilated(
        x, w, window_strides=(stride, stride), padding=((1, 1), (1, 1)),
        dimension_numbers=("NCHW", "OIHW", "NCHW"))
    mean = jnp.mean(conv, axis=(0, 2, 3), keepdims=True)
    var = jnp.mean((conv - mean) ** 2, axis=(0, 2, 3), keepdims=True)
    y = (conv - mean) * jax.lax.rsqrt(var + EPS)
    y = y * gamma.reshape(1, -1, 1, 1) + beta.reshape(1, -1, 1, 1)
    return jnp.maximum(y, 0.0)


if __name__ == "__main__":
    key = jax.random.PRNGKey(0)
    k_x, k_w = jax.random.split(key)

    N, Cin, H, W = 2, 4, 16, 16
    Cout, stride = 8, 2

    x = jax.random.normal(k_x, (N, Cin, H, W), dtype=jnp.float32)
    # PyTorch layout (Cout, Cin, KH, KW), no bias.
    conv_w = 0.1 * jax.random.normal(k_w, (Cout, Cin, 3, 3), dtype=jnp.float32)
    # BatchNorm affine params at PyTorch defaults (weight=1, bias=0).
    bn_gamma = jnp.ones((Cout,), dtype=jnp.float32)
    bn_beta = jnp.zeros((Cout,), dtype=jnp.float32)

    out = dimension_increasing_forward(x, conv_w, bn_gamma, bn_beta,
                                       stride=stride)
    jax.block_until_ready(out)
    assert out.shape == (N, Cout, H // stride, W // stride), out.shape

    ref = _reference(x, conv_w, bn_gamma, bn_beta, stride)
    max_err = float(jnp.max(jnp.abs(out - ref)))
    assert max_err < 0.1, f"max abs err {max_err}"

    print("KERNEL_OK")
</pallas_src>

<mosaic_0001>
module attributes {stable_mosaic.version = 11 : i64} {
  func.func @_fused_kernel(%arg0: i32, %arg1: i32, %arg2: i32, %arg3: memref<1x64x36xbf16, #tpu.memory_space<vmem>>, %arg4: memref<36x128xbf16, #tpu.memory_space<vmem>>, %arg5: memref<1x128xf32, #tpu.memory_space<vmem>>, %arg6: memref<1x128xf32, #tpu.memory_space<vmem>>, %arg7: memref<1x8x64xf32, #tpu.memory_space<vmem>>, %arg8: memref<8x128xf32, #tpu.memory_space<vmem>>, %arg9: memref<8x128xf32, #tpu.memory_space<vmem>>, %arg10: memref<1x128xf32, #tpu.memory_space<vmem>>, %arg11: memref<1x128xf32, #tpu.memory_space<vmem>>) attributes {dimension_semantics = [#tpu.dimension_semantics<arbitrary>, #tpu.dimension_semantics<arbitrary>, #tpu.dimension_semantics<arbitrary>], iteration_bounds = array<i64: 2, 2, 1>, scalar_prefetch = 0 : i64, scratch_operands = 4 : i64, tpu.core_type = #tpu.core_type<tc>, window_params = [{transform_indices = @transform_0, window_bounds = array<i64: 1, 64, 36>}, {pipeline_mode = #tpu.pipeline_mode<synchronous>, transform_indices = @transform_1, window_bounds = array<i64: 36, 128>}, {pipeline_mode = #tpu.pipeline_mode<synchronous>, transform_indices = @transform_2, window_bounds = array<i64: 1, 128>}, {pipeline_mode = #tpu.pipeline_mode<synchronous>, transform_indices = @transform_3, window_bounds = array<i64: 1, 128>}, {transform_indices = @transform_4, window_bounds = array<i64: 1, 8, 64>}]} {
    %c0_i32 = arith.constant 0 : i32
    %0 = arith.cmpi eq, %arg1, %c0_i32 : i32
    %c0_i32_0 = arith.constant 0 : i32
    %1 = arith.cmpi eq, %arg2, %c0_i32_0 : i32
    %2 = arith.andi %0, %1 : i1
    %c0 = arith.constant 0 : index
    %c0_1 = arith.constant 0 : index
    %c0_2 = arith.constant 0 : index
    %3 = vector.load %arg3[%c0, %c0_1, %c0_2] : memref<1x64x36xbf16, #tpu.memory_space<vmem>>, vector<1x64x36xbf16>
    %4 = vector.shape_cast %3 : vector<1x64x36xbf16> to vector<64x36xbf16>
    %c0_3 = arith.constant 0 : index
    %c0_4 = arith.constant 0 : index
    %5 = vector.load %arg4[%c0_3, %c0_4] : memref<36x128xbf16, #tpu.memory_space<vmem>>, vector<36x128xbf16>
    %cst = arith.constant dense<0.000000e+00> : vector<64x128xf32>
    %6 = tpu.matmul %4, %5, %cst {dimension_numbers = #tpu.dot_dimension_numbers<[1], [0], [0], [1], [0, 0, 1, 1], [], []>} : vector<64x36xbf16>, vector<36x128xbf16>, vector<64x128xf32> -> vector<64x128xf32>
    %c0_i32_5 = arith.constant 0 : i32
    %7 = arith.cmpi eq, %arg0, %c0_i32_5 : i32
    %8 = arith.extui %7 : i1 to i32
    %c0_i32_6 = arith.constant 0 : i32
    %9 = arith.cmpi ne, %8, %c0_i32_6 : i32
    scf.if %9 {
      %13 = arith.extui %2 : i1 to i32
      %c0_i32_8 = arith.constant 0 : i32
      %14 = arith.cmpi ne, %13, %c0_i32_8 : i32
      scf.if %14 {
        %cst_19 = arith.constant 0.000000e+00 : f32
        %25 = vector.broadcast %cst_19 : f32 to vector<8x128xf32>
        %c0_20 = arith.constant 0 : index
        %c0_21 = arith.constant 0 : index
        %26 = vector.load %arg8[%c0_20, %c0_21] : memref<8x128xf32, #tpu.memory_space<vmem>>, vector<8x128xf32>
        tpu.vector_store %arg8[%c0_20, %c0_21], %25 {strides = array<i32>} : memref<8x128xf32, #tpu.memory_space<vmem>>, vector<8x128xf32>,
        %cst_22 = arith.constant 0.000000e+00 : f32
        %27 = vector.broadcast %cst_22 : f32 to vector<8x128xf32>
        %c0_23 = arith.constant 0 : index
        %c0_24 = arith.constant 0 : index
        %28 = vector.load %arg9[%c0_23, %c0_24] : memref<8x128xf32, #tpu.memory_space<vmem>>, vector<8x128xf32>
        tpu.vector_store %arg9[%c0_23, %c0_24], %27 {strides = array<i32>} : memref<8x128xf32, #tpu.memory_space<vmem>>, vector<8x128xf32>,
      } else {
      }
      %15 = vector.shape_cast %6 : vector<64x128xf32> to vector<8x8x128xf32>
      %c0_9 = arith.constant 0 : index
      %c0_10 = arith.constant 0 : index
      %16 = vector.load %arg8[%c0_9, %c0_10] : memref<8x128xf32, #tpu.memory_space<vmem>>, vector<8x128xf32>
      %cst_11 = arith.constant dense<0.000000e+00> : vector<8x128xf32>
      %17 = vector.multi_reduction <add>, %15, %cst_11 [0] : vector<8x8x128xf32> to vector<8x128xf32>
      %18 = arith.addf %16, %17 : vector<8x128xf32>
      %c0_12 = arith.constant 0 : index
      %c0_13 = arith.constant 0 : index
      %19 = vector.load %arg8[%c0_12, %c0_13] : memref<8x128xf32, #tpu.memory_space<vmem>>, vector<8x128xf32>
      tpu.vector_store %arg8[%c0_12, %c0_13], %18 {strides = array<i32>} : memref<8x128xf32, #tpu.memory_space<vmem>>, vector<8x128xf32>,
      %c0_14 = arith.constant 0 : index
      %c0_15 = arith.constant 0 : index
      %20 = vector.load %arg9[%c0_14, %c0_15] : memref<8x128xf32, #tpu.memory_space<vmem>>, vector<8x128xf32>
      %21 = arith.mulf %15, %15 : vector<8x8x128xf32>
      %cst_16 = arith.constant dense<0.000000e+00> : vector<8x128xf32>
      %22 = vector.multi_reduction <add>, %21, %cst_16 [0] : vector<8x8x128xf32> to vector<8x128xf32>
      %23 = arith.addf %20, %22 : vector<8x128xf32>
      %c0_17 = arith.constant 0 : index
      %c0_18 = arith.constant 0 : index
      %24 = vector.load %arg9[%c0_17, %c0_18] : memref<8x128xf32, #tpu.memory_space<vmem>>, vector<8x128xf32>
      tpu.vector_store %arg9[%c0_17, %c0_18], %23 {strides = array<i32>} : memref<8x128xf32, #tpu.memory_space<vmem>>, vector<8x128xf32>,
    } else {
    }
    %c1_i32 = arith.constant 1 : i32
    %10 = arith.cmpi eq, %arg0, %c1_i32 : i32
    %11 = arith.extui %10 : i1 to i32
    %c0_i32_7 = arith.constant 0 : i32
    %12 = arith.cmpi ne, %11, %c0_i32_7 : i32
    scf.if %12 {
      %13 = arith.extui %2 : i1 to i32
      %c0_i32_8 = arith.constant 0 : i32
      %14 = arith.cmpi ne, %13, %c0_i32_8 : i32
      scf.if %14 {
        %c0_17 = arith.constant 0 : index
        %c0_18 = arith.constant 0 : index
        %28 = vector.load %arg8[%c0_17, %c0_18] : memref<8x128xf32, #tpu.memory_space<vmem>>, vector<8x128xf32>
        %cst_19 = arith.constant dense<0.000000e+00> : vector<128xf32>
        %29 = vector.multi_reduction <add>, %28, %cst_19 [0] : vector<8x128xf32> to vector<128xf32>
        %30 = vector.shape_cast %29 : vector<128xf32> to vector<1x128xf32>
        %c0_20 = arith.constant 0 : index
        %c0_21 = arith.constant 0 : index
        %31 = vector.load %arg9[%c0_20, %c0_21] : memref<8x128xf32, #tpu.memory_space<vmem>>, vector<8x128xf32>
        %cst_22 = arith.constant dense<0.000000e+00> : vector<128xf32>
        %32 = vector.multi_reduction <add>, %31, %cst_22 [0] : vector<8x128xf32> to vector<128xf32>
        %33 = vector.shape_cast %32 : vector<128xf32> to vector<1x128xf32>
        %cst_23 = arith.constant 7.812500e-03 : f32
        %34 = vector.broadcast %cst_23 : f32 to vector<1x128xf32>
        %35 = arith.mulf %30, %34 : vector<1x128xf32>
        %cst_24 = arith.constant 7.812500e-03 : f32
        %36 = vector.broadcast %cst_24 : f32 to vector<1x128xf32>
        %37 = arith.mulf %33, %36 : vector<1x128xf32>
        %38 = arith.mulf %35, %35 : vector<1x128xf32>
        %39 = arith.subf %37, %38 : vector<1x128xf32>
        %cst_25 = arith.constant 0.000000e+00 : f32
        %40 = vector.broadcast %cst_25 : f32 to vector<1x128xf32>
        %41 = arith.maximumf %39, %40 : vector<1x128xf32>
        %cst_26 = arith.constant 9.99999974E-6 : f32
        %42 = vector.broadcast %cst_26 : f32 to vector<1x128xf32>
        %43 = arith.addf %41, %42 : vector<1x128xf32>
        %44 = math.rsqrt %43 : vector<1x128xf32>
        %c0_27 = arith.constant 0 : index
        %c0_28 = arith.constant 0 : index
        %45 = vector.load %arg5[%c0_27, %c0_28] : memref<1x128xf32, #tpu.memory_space<vmem>>, vector<1x128xf32>
        %46 = arith.mulf %45, %44 : vector<1x128xf32>
        %c0_29 = arith.constant 0 : index
        %c0_30 = arith.constant 0 : index
        %47 = vector.load %arg10[%c0_29, %c0_30] : memref<1x128xf32, #tpu.memory_space<vmem>>, vector<1x128xf32>
        tpu.vector_store %arg10[%c0_29, %c0_30], %46 {strides = array<i32>} : memref<1x128xf32, #tpu.memory_space<vmem>>, vector<1x128xf32>,
        %c0_31 = arith.constant 0 : index
        %c0_32 = arith.constant 0 : index
        %48 = vector.load %arg6[%c0_31, %c0_32] : memref<1x128xf32, #tpu.memory_space<vmem>>, vector<1x128xf32>
        %49 = arith.mulf %35, %46 : vector<1x128xf32>
        %50 = arith.subf %48, %49 : vector<1x128xf32>
        %c0_33 = arith.constant 0 : index
        %c0_34 = arith.constant 0 : index
        %51 = vector.load %arg11[%c0_33, %c0_34] : memref<1x128xf32, #tpu.memory_space<vmem>>, vector<1x128xf32>
        tpu.vector_store %arg11[%c0_33, %c0_34], %50 {strides = array<i32>} : memref<1x128xf32, #tpu.memory_space<vmem>>, vector<1x128xf32>,
      } else {
      }
      %c0_9 = arith.constant 0 : index
      %c0_10 = arith.constant 0 : index
      %15 = vector.load %arg10[%c0_9, %c0_10] : memref<1x128xf32, #tpu.memory_space<vmem>>, vector<1x128xf32>
      %16 = vector.broadcast %15 : vector<1x128xf32> to vector<64x128xf32>
      %17 = arith.mulf %6, %16 : vector<64x128xf32>
      %c0_11 = arith.constant 0 : index
      %c0_12 = arith.constant 0 : index
      %18 = vector.load %arg11[%c0_11, %c0_12] : memref<1x128xf32, #tpu.memory_space<vmem>>, vector<1x128xf32>
      %19 = vector.broadcast %18 : vector<1x128xf32> to vector<64x128xf32>
      %20 = arith.addf %17, %19 : vector<64x128xf32>
      %cst_13 = arith.constant 0.000000e+00 : f32
      %21 = vector.broadcast %cst_13 : f32 to vector<64x128xf32>
      %22 = arith.maximumf %20, %21 : vector<64x128xf32>
      %23 = tpu.transpose %22, [1, 0] : vector<64x128xf32> -> vector<128x64xf32>
      %24 = vector.extract_strided_slice %23 {offsets = [0, 0], sizes = [8, 64], strides = [1, 1]} : vector<128x64xf32> to vector<8x64xf32>
      %c0_14 = arith.constant 0 : index
      %c0_15 = arith.constant 0 : index
      %c0_16 = arith.constant 0 : index
      %25 = vector.load %arg7[%c0_14, %c0_15, %c0_16] : memref<1x8x64xf32, #tpu.memory_space<vmem>>, vector<1x8x64xf32>
      %26 = vector.shape_cast %25 : vector<1x8x64xf32> to vector<8x64xf32>
      %27 = vector.shape_cast %24 : vector<8x64xf32> to vector<1x8x64xf32>
      tpu.vector_store %arg7[%c0_14, %c0_15, %c0_16], %27 {strides = array<i32>} : memref<1x8x64xf32, #tpu.memory_space<vmem>>, vector<1x8x64xf32>,
    } else {
    }
    return
  }
  func.func @transform_0(%arg0: i32, %arg1: i32, %arg2: i32) -> (i32, i32, i32) {
    %c0_i32 = arith.constant 0 : i32
    %c0_i32_0 = arith.constant 0 : i32
    return %arg1, %arg2, %c0_i32 : i32, i32, i32
  }
  func.func @transform_1(%arg0: i32, %arg1: i32, %arg2: i32) -> (i32, i32) {
    %c0_i32 = arith.constant 0 : i32
    %c0_i32_0 = arith.constant 0 : i32
    %c0_i32_1 = arith.constant 0 : i32
    return %c0_i32, %c0_i32_0 : i32, i32
  }
  func.func @transform_2(%arg0: i32, %arg1: i32, %arg2: i32) -> (i32, i32) {
    %c0_i32 = arith.constant 0 : i32
    %c0_i32_0 = arith.constant 0 : i32
    %c0_i32_1 = arith.constant 0 : i32
    return %c0_i32, %c0_i32_0 : i32, i32
  }
  func.func @transform_3(%arg0: i32, %arg1: i32, %arg2: i32) -> (i32, i32) {
    %c0_i32 = arith.constant 0 : i32
    %c0_i32_0 = arith.constant 0 : i32
    %c0_i32_1 = arith.constant 0 : i32
    return %c0_i32, %c0_i32_0 : i32, i32
  }
  func.func @transform_4(%arg0: i32, %arg1: i32, %arg2: i32) -> (i32, i32, i32) {
    %0 = arith.muli %arg0, %arg1 : i32
    %1 = arith.muli %arg0, %arg2 : i32
    %c0_i32 = arith.constant 0 : i32
    %c0_i32_0 = arith.constant 0 : i32
    return %0, %c0_i32, %1 : i32, i32, i32
  }
}

</mosaic_0001>

<llo_original>
// kernel: dimension_increasing_forward.1
$region0: #{dimension_increasing_forward.1}
  #allocation0 [shape = 'u32[]', space=smem, size = 0x4, offset = 0x4, fixed_abs, tag = 'smem constant byte address 0x4 - core index']
  #allocation1 [shape = 'u32[144,128]{1,0:T(1,128)}', space=vmem, size = 0x12000, scoped, tag = 'internal scratch']
  #allocation2 [shape = 'f32[8,128]{1,0:T(8,128)}', space=vmem, size = 0x1000, scoped, tag = 'scratch operand']
  #allocation3 [shape = 'f32[8,128]{1,0:T(8,128)}', space=vmem, size = 0x1000, scoped, tag = 'scratch operand']
  #allocation4 [shape = 'f32[1,128]{1,0:T(1,128)}', space=vmem, size = 0x200, scoped, tag = 'scratch operand']
  #allocation5 [shape = 'f32[1,128]{1,0:T(1,128)}', space=vmem, size = 0x200, scoped, tag = 'scratch operand']
  %s0 = inlined_call_operand.vmem [shape: bf16[2,64,36], index: 0, kind: input, shape index: {}]
  %s1 = inlined_call_operand.vmem [shape: bf16[36,128], index: 1, kind: input, shape index: {}]
  %s2 = inlined_call_operand.vmem [shape: f32[1,128], index: 2, kind: input, shape index: {}]
  %s3 = inlined_call_operand.vmem [shape: f32[1,128], index: 3, kind: input, shape index: {}]
  %s4 = inlined_call_operand.vmem [shape: f32[2,8,64], index: 4, kind: output, shape index: {}]
  %s5 = sld [smem:[#allocation0]]
  $region65: #{dimension_increasing_forward.1} parent=0
    _
  %s7 = ssub.s32 1, %s5
  %s8 = scalar_select 0, %s7, %s5
  loop: start=0, step=1, limit=6
  $region2: #{dimension_increasing_forward.1} parent=0 // loop_pre_header
    _
  $region3: #{dimension_increasing_forward.1} parent=0 // loop_header
    %s10 = sphi 0, %s14
    %p11 = scmp.ge.s32.totalorder %s10, 6
    %s17 = sphi 0, %s36
    %s18 = sphi 0, %s32
    %s19 = sphi 0, %s28
    %s20 = sphi 0, %s17
    %s21 = sphi 0, %s18
    %s22 = sphi 0, %s19
    %s23 = sphi 0, %s20
    %s24 = sphi 0, %s21
    %s25 = sphi 0, %s22
    %s41 = sphi 0, %s43
    %s44 = sphi 0, %s41
    %s45 = sphi 0, %s44
    %s61 = sphi 0, %s45
    %s65 = sphi 0, %s65
    %s67 = sphi 0, %s65
    %s68 = sphi 0, %s67
    %s82 = sphi 0, %s68
    %s86 = sphi 0, %s86
    %s88 = sphi 0, %s86
    %s89 = sphi 0, %s88
    %s103 = sphi 0, %s89
    %s107 = sphi 0, %s107
    %s109 = sphi 0, %s107
    %s110 = sphi 0, %s109
    %s124 = sphi 0, %s110
    %s136 = sphi 0, %s138
    %s139 = sphi 0, %s136
    %s140 = sphi 0, %s139
    %s156 = sphi 0, %s140
  $region4: #{dimension_increasing_forward.1} parent=0 // loop_header_branch
    %13 = sbr.rel (%p11) target = $region8
  $region5: #{dimension_increasing_forward.1} parent=0 // loop_body
    %s15 = ssub.s32 %s10, 1
    %s16 = ssub.s32 %s10, 2
    %s26 = sadd.s32 1, %s19
    %p27 = scmp.ge.s32.totalorder %s26, 1
    %s28 = scalar_select %p27, 0, %s26
    %s29 = sadd.s32 1, %s18
    %s30 = scalar_select %p27, %s29, %s18
    %p31 = scmp.ge.s32.totalorder %s30, 2
    %s32 = scalar_select %p31, 0, %s30
    %s33 = sadd.s32 1, %s17
    %s34 = scalar_select %p31, %s33, %s17
    %p35 = scmp.ge.s32.totalorder %s34, 2
    %s36 = scalar_select %p35, 0, %s34
    %s37 = ssub.s32 %s18, %s32
    %s38 = ssub.s32 %s19, %s28
    %s39 = sor.u32 %s37, %s38
    %p40 = scmp.eq.s32.totalorder %s39, 0
    %s42 = sadd.s32 %s41, 1
    %s43 = scalar_select %p40, %s41, %s42
    %p46 = pneg %p40
    %p47 = scmp.eq.s32.totalorder %s10, 3
    %p48 = por %p46, %p47
    %p49 = scmp.ne.s32.totalorder %s41, %s44
    %p50 = scmp.eq.s32.totalorder %s10, 0
    %p51 = por %p49, %p50
    %p52 = scmp.ne.s32.totalorder %s41, %s44
    %p53 = scmp.eq.s32.totalorder %s15, 3
    %p54 = por %p52, %p53
    %p55 = scmp.ne.s32.totalorder %s44, %s45
    %p56 = scmp.eq.s32.totalorder %s15, 0
    %p57 = por %p55, %p56
    %p58 = scmp.ne.s32.totalorder %s44, %s45
    %p59 = scmp.eq.s32.totalorder %s16, 3
    %p60 = por %p58, %p59
    %p62 = scmp.ne.s32.totalorder %s45, %s61
    %p63 = scmp.eq.s32.totalorder %s16, 0
    %p64 = por %p62, %p63
    %s66 = sadd.s32 %s65, 1
    %p69 = scmp.eq.s32.totalorder %s10, 3
    %p70 = scmp.ne.s32.totalorder %s65, %s67
    %p71 = scmp.eq.s32.totalorder %s10, 0
    %p72 = por %p70, %p71
    %p73 = scmp.ne.s32.totalorder %s65, %s67
    %p74 = scmp.eq.s32.totalorder %s15, 3
    %p75 = por %p73, %p74
    %p76 = scmp.ne.s32.totalorder %s67, %s68
    %p77 = scmp.eq.s32.totalorder %s15, 0
    %p78 = por %p76, %p77
    %p79 = scmp.ne.s32.totalorder %s67, %s68
    %p80 = scmp.eq.s32.totalorder %s16, 3
    %p81 = por %p79, %p80
    %p83 = scmp.ne.s32.totalorder %s68, %s82
    %p84 = scmp.eq.s32.totalorder %s16, 0
    %p85 = por %p83, %p84
    %s87 = sadd.s32 %s86, 1
    %p90 = scmp.eq.s32.totalorder %s10, 3
    %p91 = scmp.ne.s32.totalorder %s86, %s88
    %p92 = scmp.eq.s32.totalorder %s10, 0
    %p93 = por %p91, %p92
    %p94 = scmp.ne.s32.totalorder %s86, %s88
    %p95 = scmp.eq.s32.totalorder %s15, 3
    %p96 = por %p94, %p95
    %p97 = scmp.ne.s32.totalorder %s88, %s89
    %p98 = scmp.eq.s32.totalorder %s15, 0
    %p99 = por %p97, %p98
    %p100 = scmp.ne.s32.totalorder %s88, %s89
    %p101 = scmp.eq.s32.totalorder %s16, 3
    %p102 = por %p100, %p101
    %p104 = scmp.ne.s32.totalorder %s89, %s103
    %p105 = scmp.eq.s32.totalorder %s16, 0
    %p106 = por %p104, %p105
    %s108 = sadd.s32 %s107, 1
    %p111 = scmp.eq.s32.totalorder %s10, 3
    %p112 = scmp.ne.s32.totalorder %s107, %s109
    %p113 = scmp.eq.s32.totalorder %s10, 0
    %p114 = por %p112, %p113
    %p115 = scmp.ne.s32.totalorder %s107, %s109
    %p116 = scmp.eq.s32.totalorder %s15, 3
    %p117 = por %p115, %p116
    %p118 = scmp.ne.s32.totalorder %s109, %s110
    %p119 = scmp.eq.s32.totalorder %s15, 0
    %p120 = por %p118, %p119
    %p121 = scmp.ne.s32.totalorder %s109, %s110
    %p122 = scmp.eq.s32.totalorder %s16, 3
    %p123 = por %p121, %p122
    %p125 = scmp.ne.s32.totalorder %s110, %s124
    %p126 = scmp.eq.s32.totalorder %s16, 0
    %p127 = por %p125, %p126
    %s128 = smul.u32 %s17, %s18
    %s129 = smul.u32 %s17, %s19
    %s130 = smul.u32 %s36, %s32
    %s131 = smul.u32 %s36, %s28
    %s132 = ssub.s32 %s128, %s130
    %s133 = ssub.s32 %s129, %s131
    %s134 = sor.u32 %s132, %s133
    %p135 = scmp.eq.s32.totalorder %s134, 0
    %s137 = sadd.s32 %s136, 1
    %s138 = scalar_select %p135, %s136, %s137
    %p141 = pneg %p135
    %p142 = scmp.eq.s32.totalorder %s10, 3
    %p143 = por %p141, %p142
    %p144 = scmp.ne.s32.totalorder %s136, %s139
    %p145 = scmp.eq.s32.totalorder %s10, 0
    %p146 = por %p144, %p145
    %p147 = scmp.ne.s32.totalorder %s136, %s139
    %p148 = scmp.eq.s32.totalorder %s15, 3
    %p149 = por %p147, %p148
    %p150 = scmp.ne.s32.totalorder %s139, %s140
    %p151 = scmp.eq.s32.totalorder %s15, 0
    %p152 = por %p150, %p151
    %p153 = scmp.ne.s32.totalorder %s139, %s140
    %p154 = scmp.eq.s32.totalorder %s16, 3
    %p155 = por %p153, %p154
    %p157 = scmp.ne.s32.totalorder %s140, %s156
    %p158 = scmp.eq.s32.totalorder %s16, 0
    %p159 = por %p157, %p158
    %p160 = scmp.le.s32.totalorder 1, %s10
    %p161 = scmp.lt.s32.totalorder %s10, 5
    %p162 = pnand %p160, %p161
    %p163 = pneg %p162
    // Predicated region
    $region9: #{dimension_increasing_forward.1} parent=5 // pred_check
      _
    $region10: #{dimension_increasing_forward.1} parent=5 // pred_check_branch
      %165 = sbr.rel (%p162) target = $region12
    $region11: #{dimension_increasing_forward.1} parent=5 // pred_region
      %s166 = ssub.s32 %s10, 1
      // Predicated region
      $region13: #{dimension_increasing_forward.1} parent=11 // pred_check
        %p167 = pneg %p78
      $region14: #{dimension_increasing_forward.1} parent=11 // pred_check_branch
        %169 = sbr.rel (%p167) target = $region16
      $region15: #{dimension_increasing_forward.1} parent=11 // pred_region
        _
      $region16: #{dimension_increasing_forward.1} parent=11 // pred_fallthru
        _
      // Predicated region
      $region17: #{dimension_increasing_forward.1} parent=11 // pred_check
        %p170 = pneg %p99
      $region18: #{dimension_increasing_forward.1} parent=11 // pred_check_branch
        %172 = sbr.rel (%p170) target = $region20
      $region19: #{dimension_increasing_forward.1} parent=11 // pred_region
        _
      $region20: #{dimension_increasing_forward.1} parent=11 // pred_fallthru
        _
      // Predicated region
      $region21: #{dimension_increasing_forward.1} parent=11 // pred_check
        %p173 = pneg %p120
      $region22: #{dimension_increasing_forward.1} parent=11 // pred_check_branch
        %175 = sbr.rel (%p173) target = $region24
      $region23: #{dimension_increasing_forward.1} parent=11 // pred_region
        _
      $region24: #{dimension_increasing_forward.1} parent=11 // pred_fallthru
        _
    $region12: #{dimension_increasing_forward.1} parent=5 // pred_fallthru
      _
    %p176 = scmp.lt.s32.totalorder %s10, 4
    // Predicated region
    $region25: #{dimension_increasing_forward.1} parent=5 // pred_check
      %p177 = pneg %p176
    $region26: #{dimension_increasing_forward.1} parent=5 // pred_check_branch
      %179 = sbr.rel (%p177) target = $region28
    $region27: #{dimension_increasing_forward.1} parent=5 // pred_region
      // Predicated region
      $region29: #{dimension_increasing_forward.1} parent=27 // pred_check
        %p180 = pneg %p51
      $region30: #{dimension_increasing_forward.1} parent=27 // pred_check_branch
        %182 = sbr.rel (%p180) target = $region32
      $region31: #{dimension_increasing_forward.1} parent=27 // pred_region
        %s183 = smul.u32 8, %s19
        %p184 = scmp.lt.s32.totalorder %s18, 1
        %s185 = scalar_select %p184, %s18, 1
        %p186 = scmp.lt.s32.totalorder %s183, 7
        %s187 = scalar_select %p186, %s183, 7
        %s188 = smul.addr %s185, 8
        %s189 = sadd.s32 %s187, %s188
        %s190 = smul.addr %s189, 4
        %s191 = scalar_lea.vmem %s0, %s190
        %s192 = smul.u32 8, %s19
      $region32: #{dimension_increasing_forward.1} parent=27 // pred_fallthru
        _
    $region28: #{dimension_increasing_forward.1} parent=5 // pred_fallthru
      _
    %p193 = scmp.le.s32.totalorder 1, %s10
    %p194 = scmp.lt.s32.totalorder %s10, 5
    %p195 = pnand %p193, %p194
    %p196 = pneg %p195
    // Predicated region
    $region33: #{dimension_increasing_forward.1} parent=5 // pred_check
      _
    $region34: #{dimension_increasing_forward.1} parent=5 // pred_check_branch
      %198 = sbr.rel (%p195) target = $region36
    $region35: #{dimension_increasing_forward.1} parent=5 // pred_region
      %s199 = ssub.s32 %s10, 1
      %s200 = smul.u32 8, %s22
      %p201 = scmp.lt.s32.totalorder %s21, 1
      %s202 = scalar_select %p201, %s21, 1
      %p203 = scmp.lt.s32.totalorder %s200, 7
      %s204 = scalar_select %p203, %s200, 7
      %s205 = smul.addr %s202, 8
      %s206 = sadd.s32 %s204, %s205
      %s207 = smul.addr %s206, 4
      %s208 = scalar_lea.vmem %s0, %s207
      %p209 = pneg %p57
      %p210 = pneg %p54
      %p211 = pneg %p78
      %p212 = pneg %p75
      %p213 = pneg %p99
      %p214 = pneg %p96
      %p215 = pneg %p120
      %p216 = pneg %p117
      %p217 = pneg %p152
      %p218 = pneg %p149
      %s219 = smul.u32 %s20, %s21
      %s220 = smul.u32 %s20, %s22
      %p221 = scmp.lt.s32.totalorder %s219, 1
      %s222 = scalar_select %p221, %s219, 1
      %p223 = scmp.lt.s32.totalorder %s220, 0
      %s224 = scalar_select %p223, %s220, 0
      %s225 = sadd.s32 %s224, %s222
      %s226 = smul.addr %s225, 8
      %s227 = scalar_lea.vmem %s4, %s226
      %s228 = smul.u32 8, %s22
      %p229 = scmp.lt.s32.totalorder %s21, 1
      %s230 = scalar_select %p229, %s21, 1
      %p231 = scmp.lt.s32.totalorder %s228, 7
      %s232 = scalar_select %p231, %s228, 7
      %s233 = smul.addr %s230, 8
      %s234 = sadd.s32 %s232, %s233
      %s235 = smul.addr %s234, 4
      %s236 = scalar_lea.vmem %s0, %s235
      %s237 = smul.u32 8, %s22
      %s238 = smul.u32 %s20, %s21
      %s239 = smul.u32 %s20, %s22
      %p240 = scmp.lt.s32.totalorder %s238, 1
      %s241 = scalar_select %p240, %s238, 1
      %p242 = scmp.lt.s32.totalorder %s239, 0
      %s243 = scalar_select %p242, %s239, 0
      %s244 = sadd.s32 %s243, %s241
      %s245 = smul.addr %s244, 8
      %s246 = scalar_lea.vmem %s4, %s245
      %s247 = smul.u32 %s20, %s21
      %s248 = smul.u32 %s20, %s22
      %p250 = scmp.eq.s32.totalorder %s21, 0
      %p251 = scmp.eq.s32.totalorder %s22, 0
      %p252 = pnand %p250, %p251
      %p253 = pneg %p252
      %v254 = vld [vmem:[%s236] sm:$0xf]
      %v255 = vld [vmem:[%s236 + $0x4] sm:$0xf]
      %v256 = vld [vmem:[%s236 + $0x8] sm:$0xf]
      %v257 = vld [vmem:[%s236 + $0xc] sm:$0xf]
      %v258 = vld [vmem:[%s236 + $0x10] sm:$0xf]
      %v259 = vld [vmem:[%s236 + $0x14] sm:$0xf]
      %v260 = vld [vmem:[%s236 + $0x18] sm:$0xf]
      %v261 = vld [vmem:[%s236 + $0x1c] sm:$0xf]
      %v262 = vld [vmem:[%s1] sm:$0xf]
      %v263 = vld [vmem:[%s1 + $0x4] sm:$0xf]
      %v264 = vld [vmem:[%s1 + $0x8] sm:$0xf]
      %v265 = vld [vmem:[%s1 + $0xc] sm:$0xf]
      %v266 = vld [vmem:[%s1 + $0x10] sm:$0x3]
      %v275 = vunpack.c.l.b16 %v254
      %v276 = vunpack.c.l.b16 %v255
      %v277 = vunpack.c.l.b16 %v256
      %v278 = vunpack.c.l.b16 %v257
      %v279 = vunpack.c.l.b16 %v258
      %v280 = vunpack.c.l.b16 %v259
      %v281 = vunpack.c.l.b16 %v260
      %v282 = vunpack.c.l.b16 %v261
      %v283 = vpack.c.b16 %v276, %v275
      %v284 = vpack.c.b16 %v278, %v277
      %v285 = vpack.c.b16 %v280, %v279
      %v286 = vpack.c.b16 %v282, %v281
      %v292 = vunpack.c.l.b16 %v262
      %v293 = vunpack.c.l.b16 %v263
      %v294 = vunpack.c.l.b16 %v264
      %v295 = vunpack.c.l.b16 %v265
      %v296 = vunpack.c.l.b16 %v266
      %v297 = vpack.c.b16 %v293, %v292
      %v298 = vpack.c.b16 %v295, %v294
      %v299 = vpack.c.b16 %v296, %v296
      %vm302 = vcmask 293888
      %v304 = vsel %vm302, %v283, 0
      %v307 = vsel %vm302, %v284, 0
      %v310 = vsel %vm302, %v285, 0
      %v313 = vsel %vm302, %v286, 0
      %vm315 = vcmask 1041408
      %v317 = vsel %vm315, %v299, 0
      %319 = vmatprep.subr.bf16.mxu0 0
      %320 = vmatpush1.bf16.msra.mxu0 %v297
      %321 = vmatprep.subr.bf16.mxu0 0
      %322 = vmatpush1.bf16.msra.mxu0 %v298
      %323 = vmatprep.subr.bf16.mxu0 0
      %324 = vmatpush1.bf16.msra.mxu0 %v317
      %325 = vmatprep.subr.bf16.mxu0 0
      %326 = vmatpush1.bf16.msra.mxu0 0
      %327 = vmatprep.subr.bf16.mxu0 0
      %328 = vmatpush1.bf16.msra.mxu0 0
      %329 = vmatprep.subr.bf16.mxu0 0
      %330 = vmatpush1.bf16.msra.mxu0 0
      %331 = vmatprep.subr.bf16.mxu0 0
      %332 = vmatpush1.bf16.msra.mxu0 0
      %333 = vmatprep.subr.bf16.mxu0 0
      %334 = vmatpush1.bf16.msra.mxu0 0
      %335 = vmatprep.subr.bf16.mxu0 0
      %336 = vmatpush1.bf16.msra.mxu0 0
      %337 = vmatprep.subr.bf16.mxu0 0
      %338 = vmatpush1.bf16.msra.mxu0 0
      %339 = vmatprep.subr.bf16.mxu0 0
      %340 = vmatpush1.bf16.msra.mxu0 0
      %341 = vmatprep.subr.bf16.mxu0 0
      %342 = vmatpush1.bf16.msra.mxu0 0
      %343 = vmatprep.subr.bf16.mxu0 0
      %344 = vmatpush1.bf16.msra.mxu0 0
      %345 = vmatprep.subr.bf16.mxu0 0
      %346 = vmatpush1.bf16.msra.mxu0 0
      %347 = vmatprep.subr.bf16.mxu0 0
      %348 = vmatpush1.bf16.msra.mxu0 0
      %349 = vmatprep.subr.bf16.mxu0 0
      %350 = vmatpush1.bf16.msra.mxu0 0
      %351 = vmatprep.mubr.bf16.mxu0 0
      %352 = vmatmul.mubr.bf16.gmra.mrb[0].mxu0 %v304
      %v353 = vpop.f32.mrb[0].mxu0
      %v354 = vadd.f32 0.0, %v353
      %v355 = vpop.f32.mrb[0].mxu0
      %v356 = vpop.f32.mrb[0].mxu0
      %v357 = vadd.f32 0.0, %v356
      %v358 = vpop.f32.mrb[0].mxu0
      %359 = vmatprep.mubr.bf16.mxu0 0
      %360 = vmatmul.mubr.bf16.gmra.mrb[0].mxu0 %v307
      %v361 = vpop.f32.mrb[0].mxu0
      %v362 = vadd.f32 0.0, %v361
      %v363 = vpop.f32.mrb[0].mxu0
      %v364 = vpop.f32.mrb[0].mxu0
      %v365 = vadd.f32 0.0, %v364
      %v366 = vpop.f32.mrb[0].mxu0
      %367 = vmatprep.mubr.bf16.mxu0 0
      %368 = vmatmul.mubr.bf16.gmra.mrb[0].mxu0 %v310
      %v369 = vpop.f32.mrb[0].mxu0
      %v370 = vadd.f32 0.0, %v369
      %v371 = vpop.f32.mrb[0].mxu0
      %v372 = vpop.f32.mrb[0].mxu0
      %v373 = vadd.f32 0.0, %v372
      %v374 = vpop.f32.mrb[0].mxu0
      %375 = vmatprep.mubr.bf16.mxu0 0
      %376 = vmatmul.mubr.bf16.gmra.mrb[0].mxu0 %v313
      %v377 = vpop.f32.mrb[0].mxu0
      %v378 = vadd.f32 0.0, %v377
      %v379 = vpop.f32.mrb[0].mxu0
      %v380 = vpop.f32.mrb[0].mxu0
      %v381 = vadd.f32 0.0, %v380
      %v382 = vpop.f32.mrb[0].mxu0
      %383 = vdwg.mxu0
      %p384 = scmp.eq.s32.totalorder %s20, 0
      // Predicated region
      $region37: #{dimension_increasing_forward.1} parent=35 // pred_check
        %p385 = pneg %p384
      $region38: #{dimension_increasing_forward.1} parent=35 // pred_check_branch
        %387 = sbr.rel (%p385) target = $region40
      $region39: #{dimension_increasing_forward.1} parent=35 // pred_region
        // Predicated region
        $region41: #{dimension_increasing_forward.1} parent=39 // pred_check
          _
        $region42: #{dimension_increasing_forward.1} parent=39 // pred_check_branch
          %389 = sbr.rel (%p252) target = $region44
        $region43: #{dimension_increasing_forward.1} parent=39 // pred_region
          %390 = vst [vmem:[#allocation2] sm:$0xff] 0.0
          %391 = vst [vmem:[#allocation3] sm:$0xff] 0.0
        $region44: #{dimension_increasing_forward.1} parent=39 // pred_fallthru
          _
        %v392 = vld [vmem:[#allocation2] sm:$0xff]
        %v393 = vadd.f32 %v354, %v357
        %v394 = vadd.f32 %v393, %v362
        %v395 = vadd.f32 %v394, %v365
        %v396 = vadd.f32 %v395, %v370
        %v397 = vadd.f32 %v396, %v373
        %v398 = vadd.f32 %v397, %v378
        %v399 = vadd.f32 %v398, %v381
        %v400 = vadd.f32 %v392, %v399
        %401 = vst [vmem:[#allocation2] sm:$0xff] %v400
        %v402 = vld [vmem:[#allocation3] sm:$0xff]
        %v403 = vmul.f32 %v354, %v354
        %v404 = vmul.f32 %v357, %v357
        %v405 = vmul.f32 %v362, %v362
        %v406 = vmul.f32 %v365, %v365
        %v407 = vmul.f32 %v370, %v370
        %v408 = vmul.f32 %v373, %v373
        %v409 = vmul.f32 %v378, %v378
        %v410 = vmul.f32 %v381, %v381
        %v411 = vadd.f32 %v403, %v404
        %v412 = vadd.f32 %v411, %v405
        %v413 = vadd.f32 %v412, %v406
        %v414 = vadd.f32 %v413, %v407
        %v415 = vadd.f32 %v414, %v408
        %v416 = vadd.f32 %v415, %v409
        %v417 = vadd.f32 %v416, %v410
        %v418 = vadd.f32 %v402, %v417
        %419 = vst [vmem:[#allocation3] sm:$0xff] %v418
      $region40: #{dimension_increasing_forward.1} parent=35 // pred_fallthru
        _
      %p420 = scmp.eq.s32.totalorder %s20, 1
      // Predicated region
      $region45: #{dimension_increasing_forward.1} parent=35 // pred_check
        %p421 = pneg %p420
      $region46: #{dimension_increasing_forward.1} parent=35 // pred_check_branch
        %423 = sbr.rel (%p421) target = $region48
      $region47: #{dimension_increasing_forward.1} parent=35 // pred_region
        // Predicated region
        $region49: #{dimension_increasing_forward.1} parent=47 // pred_check
          _
        $region50: #{dimension_increasing_forward.1} parent=47 // pred_check_branch
          %425 = sbr.rel (%p252) target = $region52
        $region51: #{dimension_increasing_forward.1} parent=47 // pred_region
          %v426 = vld [vmem:[#allocation2] sm:$0xff]
          %v427 = vrot.slane %v426, 4
          %v428 = vadd.f32 %v426, %v427
          %v429 = vrot.slane %v428, 2
          %v430 = vadd.f32 %v428, %v429
          %v431 = vrot.slane %v430, 1
          %v432 = vadd.f32 %v430, %v431
          %v433 = vld [vmem:[#allocation3] sm:$0xff]
          %v434 = vrot.slane %v433, 4
          %v435 = vadd.f32 %v433, %v434
          %v436 = vrot.slane %v435, 2
          %v437 = vadd.f32 %v435, %v436
          %v438 = vrot.slane %v437, 1
          %v439 = vadd.f32 %v437, %v438
          %v440 = vmul.f32 %v432, 0.0078125
          %v441 = vmul.f32 %v439, 0.0078125
          %v442 = vmul.f32 %v440, %v440
          %v443 = vsub.f32 %v441, %v442
          %v444 = vmax.f32 %v443, 0.0
          %v445 = vadd.f32 %v444, 1e-05
          %v446 = vrsqrt.pop %v445
          %v447 = vld [vmem:[%s2] sm:$0x1]
          %v448 = vmul.f32 %v447, %v446
          %449 = vst [vmem:[#allocation4] sm:$0x1] %v448
          %v450 = vld [vmem:[%s3] sm:$0x1]
          %v451 = vmul.f32 %v440, %v448
          %v452 = vsub.f32 %v450, %v451
          %453 = vst [vmem:[#allocation5] sm:$0x1] %v452
        $region52: #{dimension_increasing_forward.1} parent=47 // pred_fallthru
          _
        %v454 = vld [vmem:[#allocation4] sm:$0x1]
        %v456 = vlaneseq
        %v457 = vshrl.u32 %v456, 7
        %v458 = vsub.s32 0, %v457
        %v459 = vrot.slane %v454, %v458
        %v461 = vmul.f32 %v354, %v459
        %v462 = vmul.f32 %v357, %v459
        %v463 = vmul.f32 %v362, %v459
        %v464 = vmul.f32 %v365, %v459
        %v465 = vmul.f32 %v370, %v459
        %v466 = vmul.f32 %v373, %v459
        %v467 = vmul.f32 %v378, %v459
        %v468 = vmul.f32 %v381, %v459
        %v469 = vld [vmem:[#allocation5] sm:$0x1]
        %v471 = vlaneseq
        %v472 = vshrl.u32 %v471, 7
        %v473 = vsub.s32 0, %v472
        %v474 = vrot.slane %v469, %v473
        %v476 = vadd.f32 %v461, %v474
        %v477 = vadd.f32 %v462, %v474
        %v478 = vadd.f32 %v463, %v474
        %v479 = vadd.f32 %v464, %v474
        %v480 = vadd.f32 %v465, %v474
        %v481 = vadd.f32 %v466, %v474
        %v482 = vadd.f32 %v467, %v474
        %v483 = vadd.f32 %v468, %v474
        %v484 = vmax.f32 %v476, 0.0
        %v485 = vmax.f32 %v477, 0.0
        %v486 = vmax.f32 %v478, 0.0
        %v487 = vmax.f32 %v479, 0.0
        %v488 = vmax.f32 %v480, 0.0
        %v489 = vmax.f32 %v481, 0.0
        %v490 = vmax.f32 %v482, 0.0
        %v491 = vmax.f32 %v483, 0.0
        %492 = vxpose.xlu0.b32.start [1/16] %v484, 128
        %493 = vxpose.xlu0.b32.cont [2/16] %v485, 128
        %494 = vxpose.xlu0.b32.cont [3/16] %v486, 128
        %495 = vxpose.xlu0.b32.cont [4/16] %v487, 128
        %496 = vxpose.xlu0.b32.cont [5/16] %v488, 128
        %497 = vxpose.xlu0.b32.cont [6/16] %v489, 128
        %498 = vxpose.xlu0.b32.cont [7/16] %v490, 128
        %499 = vxpose.xlu0.b32.cont [8/16] %v491, 128
        %500 = vxpose.xlu0.b32.cont [9/16] 0.0, 128
        %501 = vxpose.xlu0.b32.cont [10/16] 0.0, 128
        %502 = vxpose.xlu0.b32.cont [11/16] 0.0, 128
        %503 = vxpose.xlu0.b32.cont [12/16] 0.0, 128
        %504 = vxpose.xlu0.b32.cont [13/16] 0.0, 128
        %505 = vxpose.xlu0.b32.cont [14/16] 0.0, 128
        %506 = vxpose.xlu0.b32.cont [15/16] 0.0, 128
        %507 = vxpose.xlu0.b32.end [16/16] 0.0, 128
        %v508 = vpop.trf.xlu0
        %v509 = vpop.trf.xlu0
        %v510 = vpop.trf.xlu0
        %v511 = vpop.trf.xlu0
        %v512 = vpop.trf.xlu0
        %v513 = vpop.trf.xlu0
        %v514 = vpop.trf.xlu0
        %v515 = vpop.trf.xlu0
        %v516 = vpop.trf.xlu0
        %v517 = vpop.trf.xlu0
        %v518 = vpop.trf.xlu0
        %v519 = vpop.trf.xlu0
        %v520 = vpop.trf.xlu0
        %v521 = vpop.trf.xlu0
        %v522 = vpop.trf.xlu0
        %v523 = vpop.trf.xlu0
        %vm524 = vcmask 523264
        %525 = vst.msk [vmem:[%s246] sm:$0xff] %vm524, %v508
      $region48: #{dimension_increasing_forward.1} parent=35 // pred_fallthru
        _
      %s526 = smul.u32 %s20, %s21
      %s527 = smul.u32 %s20, %s22
      %p528 = scmp.lt.s32.totalorder %s526, 1
      %s529 = scalar_select %p528, %s526, 1
      %p530 = scmp.lt.s32.totalorder %s527, 0
      %s531 = scalar_select %p530, %s527, 0
      %s532 = sadd.s32 %s531, %s529
      %s533 = smul.addr %s532, 8
      %s534 = scalar_lea.vmem %s4, %s533
      // Predicated region
      $region53: #{dimension_increasing_forward.1} parent=35 // pred_check
        %p535 = pneg %p149
      $region54: #{dimension_increasing_forward.1} parent=35 // pred_check_branch
        %537 = sbr.rel (%p535) target = $region56
      $region55: #{dimension_increasing_forward.1} parent=35 // pred_region
        %s538 = smul.u32 %s20, %s21
        %s539 = smul.u32 %s20, %s22
      $region56: #{dimension_increasing_forward.1} parent=35 // pred_fallthru
        _
    $region36: #{dimension_increasing_forward.1} parent=5 // pred_fallthru
      _
    %p540 = scmp.le.s32.totalorder 2, %s10
    // Predicated region
    $region57: #{dimension_increasing_forward.1} parent=5 // pred_check
      %p541 = pneg %p540
    $region58: #{dimension_increasing_forward.1} parent=5 // pred_check_branch
      %543 = sbr.rel (%p541) target = $region60
    $region59: #{dimension_increasing_forward.1} parent=5 // pred_region
      %s544 = ssub.s32 %s10, 2
      // Predicated region
      $region61: #{dimension_increasing_forward.1} parent=59 // pred_check
        %p545 = pneg %p155
      $region62: #{dimension_increasing_forward.1} parent=59 // pred_check_branch
        %547 = sbr.rel (%p545) target = $region64
      $region63: #{dimension_increasing_forward.1} parent=59 // pred_region
        %s548 = smul.u32 %s23, %s24
        %s549 = smul.u32 %s23, %s25
        %p550 = scmp.lt.s32.totalorder %s548, 1
        %s551 = scalar_select %p550, %s548, 1
        %p552 = scmp.lt.s32.totalorder %s549, 0
        %s553 = scalar_select %p552, %s549, 0
        %s554 = sadd.s32 %s553, %s551
        %s555 = smul.addr %s554, 8
        %s556 = scalar_lea.vmem %s4, %s555
      $region64: #{dimension_increasing_forward.1} parent=59 // pred_fallthru
        _
    $region60: #{dimension_increasing_forward.1} parent=5 // pred_fallthru
      _
  $region6: #{dimension_increasing_forward.1} parent=0 // loop_footer
    %s14 = sadd.s32 1, %s10
  $region7: #{dimension_increasing_forward.1} parent=0 // loop_footer_branch
    %9 = sbr.rel target = $region3
  $region8: #{dimension_increasing_forward.1} parent=0 // loop_exit
    _

</llo_original>
